<compile_context>
chip_gen: v7x
topology: tpu7x:2x2x1
jax: 0.10.0
libtpu: 0.0.40
codegen_flags: <defaults>
</compile_context>

<pallas_src>
import functools

import jax
import jax.numpy as jnp
from jax import lax
from jax.experimental import pallas as pl
from jax.experimental.pallas import tpu as pltpu

_EPS = 1e-8


def _fused_uniloss_kernel(perm_ref, a_ref, b1_ref, b2_ref, labc_ref, labr_ref,
                          out_ref, *, inv_temp, inv_two_n):
    del perm_ref  # consumed only by the BlockSpec index_maps
    a = a_ref[0]      # (TM, D) f32: rows of f1 for this tile (logically duplicated)
    b1 = b1_ref[0]    # (B, D)  f32: f2
    b2 = b2_ref[0]    # (B, D)  f32: f3
    tm = a.shape[0]
    bsz = b1.shape[0]

    # inverse L2 norms via rsqrt (EUP); eps matches F.cosine_similarity clamping.
    inv_a = lax.rsqrt(jnp.maximum(jnp.sum(a * a, axis=1, keepdims=True), _EPS * _EPS))
    inv_b1 = lax.rsqrt(jnp.maximum(jnp.sum(b1 * b1, axis=1, keepdims=True), _EPS * _EPS))
    inv_b2 = lax.rsqrt(jnp.maximum(jnp.sum(b2 * b2, axis=1, keepdims=True), _EPS * _EPS))

    # Normalize in f32 (fold 1/temperature into the LHS), cast to bf16 for the MXU.
    a_n = (a * (inv_a * inv_temp)).astype(jnp.bfloat16)     # bounded by 1/temperature
    b1_n = (b1 * inv_b1).astype(jnp.bfloat16)               # bounded by 1
    b2_n = (b2 * inv_b2).astype(jnp.bfloat16)

    nt = (((1,), (1,)), ((), ()))                            # contract over D (NT matmul)
    logit1 = lax.dot_general(a_n, b1_n, nt, preferred_element_type=jnp.float32)  # (TM, B)
    logit2 = lax.dot_general(a_n, b2_n, nt, preferred_element_type=jnp.float32)  # (TM, B)

    mask = labc_ref[...] == labr_ref[...]                    # (TM, B) bool; same for both halves
    maskf = mask.astype(jnp.float32)

    e1 = jnp.exp(logit1)
    e2 = jnp.exp(logit2)

    # Per-row sum of exp over the non-matching columns of the full (TM, 2B) strip.
    ns = jnp.sum(jnp.where(mask, 0.0, e1 + e2), axis=1, keepdims=True)            # (TM, 1)

    # Divide-free shared row loss:  -sum_{mask} log(ratio) = -sum_{mask} (logit - log(e + ns)).
    shared = -jnp.sum(
        jnp.where(mask,
                  (logit1 - jnp.log(e1 + ns)) + (logit2 - jnp.log(e2 + ns)),
                  0.0),
        axis=1, keepdims=True)                                                    # (TM, 1)

    # Eye (diagonal) correction from (TM,1) vectors:
    #   full row i   : loss = shared + logit1[i, gi] - log(2*e1[i, gi] + ns)
    #   full row i+B : loss = shared + logit2[i, gi] - log(2*e2[i, gi] + ns)
    row_off = pl.program_id(1) * tm
    ii = lax.broadcasted_iota(jnp.int32, (tm, bsz), 0)
    jj = lax.broadcasted_iota(jnp.int32, (tm, bsz), 1)
    is_diag = jj == ii + row_off
    d_logit1 = jnp.sum(jnp.where(is_diag, logit1, 0.0), axis=1, keepdims=True)
    d_logit2 = jnp.sum(jnp.where(is_diag, logit2, 0.0), axis=1, keepdims=True)
    d_e1 = jnp.sum(jnp.where(is_diag, e1, 0.0), axis=1, keepdims=True)
    d_e2 = jnp.sum(jnp.where(is_diag, e2, 0.0), axis=1, keepdims=True)

    pair_loss = (2.0 * shared + d_logit1 + d_logit2
                 - jnp.log(2.0 * d_e1 + ns) - jnp.log(2.0 * d_e2 + ns))           # (TM, 1)

    # Mask row-sum of the full (2B, 2B) matrix; the diagonal always matches itself,
    # so the torch (mask_sum > 0) branch is a no-op: mask_loss == mask_sum.
    mask_sum = 2.0 * jnp.sum(maskf, axis=1, keepdims=True)                        # (TM, 1)

    partial = jnp.sum(pair_loss / mask_sum) * inv_two_n      # this tile's share of loss_perm
    out_ref[...] = jnp.full(out_ref.shape, partial, dtype=out_ref.dtype)


def _choose_row_tile(bsz, dim):
    """Largest row tile whose per-step working set fits comfortably in scoped VMEM."""
    def working(tm):
        inputs = 2 * (tm * dim + 2 * bsz * dim) * 4   # double-buffered f32 input slabs
        temps = 10 * tm * bsz * 4                     # ~10 live f32 (tm, B) temporaries
        return inputs + temps

    budget = 24 * 1024 * 1024   # leaves headroom under the 32 MiB scoped default (v6e/v7x)
    if working(bsz) <= budget:
        return bsz
    for tm in (1024, 512, 256, 128, 64, 32, 16, 8):
        if tm < bsz and bsz % tm == 0 and working(tm) <= budget:
            return tm
    for tm in (8, 16, 32, 64, 128):                   # at least bound the temporaries
        if tm < bsz and bsz % tm == 0:
            return tm
    # TODO(synk): pad B to a multiple of 8 (with masked fake rows) so a tile always exists.
    return bsz


def unimodal_con_loss(feature_V, feature_A, feature_T, labels, temperature=0.7):
    """Pallas equivalent of UnimodalConLoss.forward (single fused kernel)."""
    fT = feature_T.astype(jnp.float32)
    fA = feature_A.astype(jnp.float32)
    fV = feature_V.astype(jnp.float32)
    bsz, dim = fT.shape

    feats = jnp.stack([fT, fA, fV], axis=0)           # (3, B, D); single HBM materialization
    if dim % 128 != 0:                                 # zero-pad D: MXU-friendly, norm/dot-invariant
        pad = 128 - dim % 128
        feats = jnp.pad(feats, ((0, 0), (0, 0), (0, pad)))
        dim += pad

    lab = labels.astype(jnp.int32)
    lab_col = lab.reshape(bsz, 1)
    lab_row = lab.reshape(1, bsz)

    # row g = (a, b1, b2) indices into `feats` for loss g:
    #   g=0: uniLoss(T, A, V); g=1: uniLoss(A, T, V); g=2: uniLoss(V, T, A)
    perm = jnp.array([[0, 1, 2],
                      [1, 0, 2],
                      [2, 0, 1]], dtype=jnp.int32)

    tm = _choose_row_tile(bsz, dim)
    n_tiles = bsz // tm

    grid_spec = pltpu.PrefetchScalarGridSpec(
        num_scalar_prefetch=1,
        grid=(3, n_tiles),
        in_specs=[
            pl.BlockSpec((1, tm, dim), lambda g, t, p: (p[g, 0], t, 0)),    # a rows (tile)
            pl.BlockSpec((1, bsz, dim), lambda g, t, p: (p[g, 1], 0, 0)),   # b1 (full, reused across t)
            pl.BlockSpec((1, bsz, dim), lambda g, t, p: (p[g, 2], 0, 0)),   # b2 (full, reused across t)
            pl.BlockSpec((tm, 1), lambda g, t, p: (t, 0)),                  # labels of the tile rows
            pl.BlockSpec((1, bsz), lambda g, t, p: (0, 0)),                 # all labels (columns)
        ],
        out_specs=pl.BlockSpec((1, 1, 8, 128), lambda g, t, p: (g, t, 0, 0)),  # lane-dense partials
    )

    # Raise scoped VMEM only when the working set needs it; cap <= 48 MiB (v7x-safe).
    working = 2 * (tm * dim + 2 * bsz * dim) * 4 + 10 * tm * bsz * 4
    cp_kwargs = dict(dimension_semantics=("parallel", "parallel"))
    if working > 12 * 1024 * 1024:
        cp_kwargs["vmem_limit_bytes"] = int(min(1.5 * working, 48 * 1024 * 1024))

    out = pl.pallas_call(
        functools.partial(_fused_uniloss_kernel,
                          inv_temp=1.0 / float(temperature),
                          inv_two_n=1.0 / (4.0 * bsz)),      # 1 / (2n) with n = 2B
        out_shape=jax.ShapeDtypeStruct((3, n_tiles, 8, 128), jnp.float32),
        grid_spec=grid_spec,
        compiler_params=pltpu.CompilerParams(**cp_kwargs),
    )(perm, feats, feats, feats, lab_col, lab_row)

    return jnp.sum(out[:, :, 0, 0]) / 3.0


# ---------------- pure-JAX reference (faithful to the torch code) ----------------
def _uniloss_ref(f1, f2, f3, labels, temperature):
    fT = jnp.concatenate([f1, f1], axis=0)
    fF = jnp.concatenate([f2, f3], axis=0)
    lab = jnp.concatenate([labels, labels], axis=0)
    n = fT.shape[0]
    a_n = fT / jnp.maximum(jnp.linalg.norm(fT, axis=1, keepdims=True), _EPS)
    b_n = fF / jnp.maximum(jnp.linalg.norm(fF, axis=1, keepdims=True), _EPS)
    sim_mat = a_n @ b_n.T
    mask = (lab[:, None] == lab[None, :]).astype(jnp.float32)
    e = jnp.exp(sim_mat / temperature)
    sim = mask * e
    no_sim_sum = jnp.sum(e - sim, axis=1, keepdims=True)
    ratio = sim / (sim + no_sim_sum)
    loss_mat = -jnp.log((1.0 - mask) + ratio + jnp.eye(n))
    mask_sum = jnp.sum(mask, axis=1)
    mask_loss = 1.0 - (mask_sum > 0).astype(jnp.float32) + mask_sum
    return jnp.sum(jnp.sum(loss_mat, axis=1) / mask_loss) / (2.0 * n)


def _ref_forward(fV, fA, fT, labels, temperature=0.7):
    return (_uniloss_ref(fT, fA, fV, labels, temperature)
            + _uniloss_ref(fA, fT, fV, labels, temperature)
            + _uniloss_ref(fV, fT, fA, labels, temperature)) / 3.0


if __name__ == "__main__":
    key = jax.random.PRNGKey(0)
    kV, kA, kT, kL = jax.random.split(key, 4)

    bsz, dim = 8, 32
    feature_V = jax.random.normal(kV, (bsz, dim), dtype=jnp.float32)
    feature_A = jax.random.normal(kA, (bsz, dim), dtype=jnp.float32)
    feature_T = jax.random.normal(kT, (bsz, dim), dtype=jnp.float32)
    labels = jax.random.randint(kL, (bsz,), 0, 3, dtype=jnp.int32)

    loss = unimodal_con_loss(feature_V, feature_A, feature_T, labels, temperature=0.7)
    loss = jax.block_until_ready(loss)

    ref = _ref_forward(feature_V, feature_A, feature_T, labels, temperature=0.7)
    assert jnp.isfinite(loss), "kernel produced non-finite loss"
    # bf16 MXU operands shift the loss by O(1e-3) relative vs. the f32 reference.
    assert jnp.allclose(loss, ref, rtol=2e-2, atol=2e-2), (loss, ref)

    print("KERNEL_OK")
</pallas_src>

<mosaic_0001>
module attributes {stable_mosaic.version = 11 : i64} {
  func.func @_fused_uniloss_kernel(%arg0: i32, %arg1: i32, %arg2: memref<3x3xi32, #tpu.memory_space<smem>>, %arg3: memref<1x8x128xf32, #tpu.memory_space<vmem>>, %arg4: memref<1x8x128xf32, #tpu.memory_space<vmem>>, %arg5: memref<1x8x128xf32, #tpu.memory_space<vmem>>, %arg6: memref<8x1xi32, #tpu.memory_space<vmem>>, %arg7: memref<1x8xi32, #tpu.memory_space<vmem>>, %arg8: memref<1x1x8x128xf32, #tpu.memory_space<vmem>>) attributes {dimension_semantics = [#tpu.dimension_semantics<parallel>, #tpu.dimension_semantics<parallel>], iteration_bounds = array<i64: 3, 1>, scalar_prefetch = 1 : i64, scratch_operands = 0 : i64, tpu.core_type = #tpu.core_type<tc>, window_params = [{transform_indices = @transform_0, window_bounds = array<i64: 1, 8, 128>}, {transform_indices = @transform_1, window_bounds = array<i64: 1, 8, 128>}, {transform_indices = @transform_2, window_bounds = array<i64: 1, 8, 128>}, {transform_indices = @transform_3, window_bounds = array<i64: 8, 1>}, {pipeline_mode = #tpu.pipeline_mode<synchronous>, transform_indices = @transform_4, window_bounds = array<i64: 1, 8>}, {transform_indices = @transform_5, window_bounds = array<i64: 1, 1, 8, 128>}]} {
    %c0 = arith.constant 0 : index
    %c0_0 = arith.constant 0 : index
    %c0_1 = arith.constant 0 : index
    %0 = vector.load %arg3[%c0, %c0_0, %c0_1] : memref<1x8x128xf32, #tpu.memory_space<vmem>>, vector<1x8x128xf32>
    %1 = vector.shape_cast %0 : vector<1x8x128xf32> to vector<8x128xf32>
    %c0_2 = arith.constant 0 : index
    %c0_3 = arith.constant 0 : index
    %c0_4 = arith.constant 0 : index
    %2 = vector.load %arg4[%c0_2, %c0_3, %c0_4] : memref<1x8x128xf32, #tpu.memory_space<vmem>>, vector<1x8x128xf32>
    %3 = vector.shape_cast %2 : vector<1x8x128xf32> to vector<8x128xf32>
    %c0_5 = arith.constant 0 : index
    %c0_6 = arith.constant 0 : index
    %c0_7 = arith.constant 0 : index
    %4 = vector.load %arg5[%c0_5, %c0_6, %c0_7] : memref<1x8x128xf32, #tpu.memory_space<vmem>>, vector<1x8x128xf32>
    %5 = vector.shape_cast %4 : vector<1x8x128xf32> to vector<8x128xf32>
    %6 = arith.mulf %1, %1 : vector<8x128xf32>
    %cst = arith.constant dense<0.000000e+00> : vector<8xf32>
    %7 = vector.multi_reduction <add>, %6, %cst [1] : vector<8x128xf32> to vector<8xf32>
    %8 = vector.shape_cast %7 : vector<8xf32> to vector<8x1xf32>
    %cst_8 = arith.constant 1.000000e-16 : f32
    %9 = vector.broadcast %cst_8 : f32 to vector<8x1xf32>
    %10 = arith.maximumf %8, %9 : vector<8x1xf32>
    %11 = math.rsqrt %10 : vector<8x1xf32>
    %12 = arith.mulf %3, %3 : vector<8x128xf32>
    %cst_9 = arith.constant dense<0.000000e+00> : vector<8xf32>
    %13 = vector.multi_reduction <add>, %12, %cst_9 [1] : vector<8x128xf32> to vector<8xf32>
    %14 = vector.shape_cast %13 : vector<8xf32> to vector<8x1xf32>
    %cst_10 = arith.constant 1.000000e-16 : f32
    %15 = vector.broadcast %cst_10 : f32 to vector<8x1xf32>
    %16 = arith.maximumf %14, %15 : vector<8x1xf32>
    %17 = math.rsqrt %16 : vector<8x1xf32>
    %18 = arith.mulf %5, %5 : vector<8x128xf32>
    %cst_11 = arith.constant dense<0.000000e+00> : vector<8xf32>
    %19 = vector.multi_reduction <add>, %18, %cst_11 [1] : vector<8x128xf32> to vector<8xf32>
    %20 = vector.shape_cast %19 : vector<8xf32> to vector<8x1xf32>
    %cst_12 = arith.constant 1.000000e-16 : f32
    %21 = vector.broadcast %cst_12 : f32 to vector<8x1xf32>
    %22 = arith.maximumf %20, %21 : vector<8x1xf32>
    %23 = math.rsqrt %22 : vector<8x1xf32>
    %cst_13 = arith.constant 1.42857146 : f32
    %24 = vector.broadcast %cst_13 : f32 to vector<8x1xf32>
    %25 = arith.mulf %11, %24 : vector<8x1xf32>
    %26 = vector.broadcast %25 : vector<8x1xf32> to vector<8x128xf32>
    %27 = arith.mulf %1, %26 : vector<8x128xf32>
    %28 = arith.truncf %27 : vector<8x128xf32> to vector<8x128xbf16>
    %29 = vector.broadcast %17 : vector<8x1xf32> to vector<8x128xf32>
    %30 = arith.mulf %3, %29 : vector<8x128xf32>
    %31 = arith.truncf %30 : vector<8x128xf32> to vector<8x128xbf16>
    %32 = vector.broadcast %23 : vector<8x1xf32> to vector<8x128xf32>
    %33 = arith.mulf %5, %32 : vector<8x128xf32>
    %34 = arith.truncf %33 : vector<8x128xf32> to vector<8x128xbf16>
    %cst_14 = arith.constant dense<0.000000e+00> : vector<8x8xf32>
    %35 = tpu.matmul %28, %31, %cst_14 {dimension_numbers = #tpu.dot_dimension_numbers<[1], [1], [0], [0], [0, 0, 1, 0], [], []>} : vector<8x128xbf16>, vector<8x128xbf16>, vector<8x8xf32> -> vector<8x8xf32>
    %cst_15 = arith.constant dense<0.000000e+00> : vector<8x8xf32>
    %36 = tpu.matmul %28, %34, %cst_15 {dimension_numbers = #tpu.dot_dimension_numbers<[1], [1], [0], [0], [0, 0, 1, 0], [], []>} : vector<8x128xbf16>, vector<8x128xbf16>, vector<8x8xf32> -> vector<8x8xf32>
    %c0_16 = arith.constant 0 : index
    %c0_17 = arith.constant 0 : index
    %37 = vector.load %arg6[%c0_16, %c0_17] : memref<8x1xi32, #tpu.memory_space<vmem>>, vector<8x1xi32>
    %c0_18 = arith.constant 0 : index
    %c0_19 = arith.constant 0 : index
    %38 = vector.load %arg7[%c0_18, %c0_19] : memref<1x8xi32, #tpu.memory_space<vmem>>, vector<1x8xi32>
    %39 = vector.broadcast %37 : vector<8x1xi32> to vector<8x8xi32>
    %40 = vector.broadcast %38 : vector<1x8xi32> to vector<8x8xi32>
    %41 = arith.cmpi eq, %39, %40 : vector<8x8xi32>
    %42 = arith.extui %41 : vector<8x8xi1> to vector<8x8xi32>
    %43 = arith.sitofp %42 : vector<8x8xi32> to vector<8x8xf32>
    %44 = math.exp %35 : vector<8x8xf32>
    %45 = math.exp %36 : vector<8x8xf32>
    %46 = arith.addf %44, %45 : vector<8x8xf32>
    %cst_20 = arith.constant 0.000000e+00 : f32
    %47 = vector.broadcast %cst_20 : f32 to vector<8x8xf32>
    %48 = arith.select %41, %47, %46 : vector<8x8xi1>, vector<8x8xf32>
    %cst_21 = arith.constant dense<0.000000e+00> : vector<8xf32>
    %49 = vector.multi_reduction <add>, %48, %cst_21 [1] : vector<8x8xf32> to vector<8xf32>
    %50 = vector.shape_cast %49 : vector<8xf32> to vector<8x1xf32>
    %51 = vector.broadcast %50 : vector<8x1xf32> to vector<8x8xf32>
    %52 = arith.addf %44, %51 : vector<8x8xf32>
    %53 = math.log %52 : vector<8x8xf32>
    %54 = arith.subf %35, %53 : vector<8x8xf32>
    %55 = vector.broadcast %50 : vector<8x1xf32> to vector<8x8xf32>
    %56 = arith.addf %45, %55 : vector<8x8xf32>
    %57 = math.log %56 : vector<8x8xf32>
    %58 = arith.subf %36, %57 : vector<8x8xf32>
    %59 = arith.addf %54, %58 : vector<8x8xf32>
    %cst_22 = arith.constant 0.000000e+00 : f32
    %60 = vector.broadcast %cst_22 : f32 to vector<8x8xf32>
    %61 = arith.select %41, %59, %60 : vector<8x8xi1>, vector<8x8xf32>
    %cst_23 = arith.constant dense<0.000000e+00> : vector<8xf32>
    %62 = vector.multi_reduction <add>, %61, %cst_23 [1] : vector<8x8xf32> to vector<8xf32>
    %63 = vector.shape_cast %62 : vector<8xf32> to vector<8x1xf32>
    %cst_24 = arith.constant 0.000000e+00 : f32
    %64 = vector.broadcast %cst_24 : f32 to vector<8x1xf32>
    %65 = arith.subf %64, %63 : vector<8x1xf32>
    %c8_i32 = arith.constant 8 : i32
    %66 = arith.muli %arg1, %c8_i32 : i32
    %67 = tpu.iota {dimensions = array<i32: 0>} : vector<8x8xi32>
    %68 = tpu.iota {dimensions = array<i32: 1>} : vector<8x8xi32>
    %69 = vector.broadcast %66 : i32 to vector<8x8xi32>
    %70 = arith.addi %67, %69 : vector<8x8xi32>
    %71 = arith.cmpi eq, %68, %70 : vector<8x8xi32>
    %cst_25 = arith.constant 0.000000e+00 : f32
    %72 = vector.broadcast %cst_25 : f32 to vector<8x8xf32>
    %73 = arith.select %71, %35, %72 : vector<8x8xi1>, vector<8x8xf32>
    %cst_26 = arith.constant dense<0.000000e+00> : vector<8xf32>
    %74 = vector.multi_reduction <add>, %73, %cst_26 [1] : vector<8x8xf32> to vector<8xf32>
    %75 = vector.shape_cast %74 : vector<8xf32> to vector<8x1xf32>
    %cst_27 = arith.constant 0.000000e+00 : f32
    %76 = vector.broadcast %cst_27 : f32 to vector<8x8xf32>
    %77 = arith.select %71, %36, %76 : vector<8x8xi1>, vector<8x8xf32>
    %cst_28 = arith.constant dense<0.000000e+00> : vector<8xf32>
    %78 = vector.multi_reduction <add>, %77, %cst_28 [1] : vector<8x8xf32> to vector<8xf32>
    %79 = vector.shape_cast %78 : vector<8xf32> to vector<8x1xf32>
    %cst_29 = arith.constant 0.000000e+00 : f32
    %80 = vector.broadcast %cst_29 : f32 to vector<8x8xf32>
    %81 = arith.select %71, %44, %80 : vector<8x8xi1>, vector<8x8xf32>
    %cst_30 = arith.constant dense<0.000000e+00> : vector<8xf32>
    %82 = vector.multi_reduction <add>, %81, %cst_30 [1] : vector<8x8xf32> to vector<8xf32>
    %83 = vector.shape_cast %82 : vector<8xf32> to vector<8x1xf32>
    %cst_31 = arith.constant 0.000000e+00 : f32
    %84 = vector.broadcast %cst_31 : f32 to vector<8x8xf32>
    %85 = arith.select %71, %45, %84 : vector<8x8xi1>, vector<8x8xf32>
    %cst_32 = arith.constant dense<0.000000e+00> : vector<8xf32>
    %86 = vector.multi_reduction <add>, %85, %cst_32 [1] : vector<8x8xf32> to vector<8xf32>
    %87 = vector.shape_cast %86 : vector<8xf32> to vector<8x1xf32>
    %cst_33 = arith.constant 2.000000e+00 : f32
    %88 = vector.broadcast %cst_33 : f32 to vector<8x1xf32>
    %89 = arith.mulf %88, %65 : vector<8x1xf32>
    %90 = arith.addf %89, %75 : vector<8x1xf32>
    %91 = arith.addf %90, %79 : vector<8x1xf32>
    %cst_34 = arith.constant 2.000000e+00 : f32
    %92 = vector.broadcast %cst_34 : f32 to vector<8x1xf32>
    %93 = arith.mulf %92, %83 : vector<8x1xf32>
    %94 = arith.addf %93, %50 : vector<8x1xf32>
    %95 = math.log %94 : vector<8x1xf32>
    %96 = arith.subf %91, %95 : vector<8x1xf32>
    %cst_35 = arith.constant 2.000000e+00 : f32
    %97 = vector.broadcast %cst_35 : f32 to vector<8x1xf32>
    %98 = arith.mulf %97, %87 : vector<8x1xf32>
    %99 = arith.addf %98, %50 : vector<8x1xf32>
    %100 = math.log %99 : vector<8x1xf32>
    %101 = arith.subf %96, %100 : vector<8x1xf32>
    %cst_36 = arith.constant dense<0.000000e+00> : vector<8xf32>
    %102 = vector.multi_reduction <add>, %43, %cst_36 [1] : vector<8x8xf32> to vector<8xf32>
    %103 = vector.shape_cast %102 : vector<8xf32> to vector<8x1xf32>
    %cst_37 = arith.constant 2.000000e+00 : f32
    %104 = vector.broadcast %cst_37 : f32 to vector<8x1xf32>
    %105 = arith.mulf %104, %103 : vector<8x1xf32>
    %106 = arith.divf %101, %105 : vector<8x1xf32>
    %107 = vector.shape_cast %106 : vector<8x1xf32> to vector<1x8x1xf32>
    %cst_38 = arith.constant dense<0.000000e+00> : vector<1xf32>
    %108 = vector.multi_reduction <add>, %107, %cst_38 [1, 2] : vector<1x8x1xf32> to vector<1xf32>
    %109 = vector.shape_cast %108 : vector<1xf32> to vector<1x1x1xf32>
    %110 = vector.extract %109[0, 0, 0] : f32 from vector<1x1x1xf32>
    %cst_39 = arith.constant 3.125000e-02 : f32
    %111 = arith.mulf %110, %cst_39 : f32
    %112 = vector.broadcast %111 : f32 to vector<1x1x8x128xf32>
    %c0_40 = arith.constant 0 : index
    %c0_41 = arith.constant 0 : index
    %c0_42 = arith.constant 0 : index
    %c0_43 = arith.constant 0 : index
    %113 = vector.load %arg8[%c0_40, %c0_41, %c0_42, %c0_43] : memref<1x1x8x128xf32, #tpu.memory_space<vmem>>, vector<1x1x8x128xf32>
    tpu.vector_store %arg8[%c0_40, %c0_41, %c0_42, %c0_43], %112 {strides = array<i32>} : memref<1x1x8x128xf32, #tpu.memory_space<vmem>>, vector<1x1x8x128xf32>,
    return
  }
  func.func @transform_0(%arg0: i32, %arg1: i32, %arg2: memref<3x3xi32, #tpu.memory_space<smem>>) -> (i32, i32, i32) {
    %0 = arith.index_cast %arg0 : i32 to index
    %c0 = arith.constant 0 : index
    %1 = memref.load %arg2[%0, %c0] : memref<3x3xi32, #tpu.memory_space<smem>>
    %c0_i32 = arith.constant 0 : i32
    %c0_i32_0 = arith.constant 0 : i32
    return %1, %arg1, %c0_i32 : i32, i32, i32
  }
  func.func @transform_1(%arg0: i32, %arg1: i32, %arg2: memref<3x3xi32, #tpu.memory_space<smem>>) -> (i32, i32, i32) {
    %0 = arith.index_cast %arg0 : i32 to index
    %c1 = arith.constant 1 : index
    %1 = memref.load %arg2[%0, %c1] : memref<3x3xi32, #tpu.memory_space<smem>>
    %c0_i32 = arith.constant 0 : i32
    %c0_i32_0 = arith.constant 0 : i32
    %c0_i32_1 = arith.constant 0 : i32
    return %1, %c0_i32, %c0_i32_0 : i32, i32, i32
  }
  func.func @transform_2(%arg0: i32, %arg1: i32, %arg2: memref<3x3xi32, #tpu.memory_space<smem>>) -> (i32, i32, i32) {
    %0 = arith.index_cast %arg0 : i32 to index
    %c2 = arith.constant 2 : index
    %1 = memref.load %arg2[%0, %c2] : memref<3x3xi32, #tpu.memory_space<smem>>
    %c0_i32 = arith.constant 0 : i32
    %c0_i32_0 = arith.constant 0 : i32
    %c0_i32_1 = arith.constant 0 : i32
    return %1, %c0_i32, %c0_i32_0 : i32, i32, i32
  }
  func.func @transform_3(%arg0: i32, %arg1: i32, %arg2: memref<3x3xi32, #tpu.memory_space<smem>>) -> (i32, i32) {
    %c0_i32 = arith.constant 0 : i32
    %c0_i32_0 = arith.constant 0 : i32
    return %arg1, %c0_i32 : i32, i32
  }
  func.func @transform_4(%arg0: i32, %arg1: i32, %arg2: memref<3x3xi32, #tpu.memory_space<smem>>) -> (i32, i32) {
    %c0_i32 = arith.constant 0 : i32
    %c0_i32_0 = arith.constant 0 : i32
    %c0_i32_1 = arith.constant 0 : i32
    return %c0_i32, %c0_i32_0 : i32, i32
  }
  func.func @transform_5(%arg0: i32, %arg1: i32, %arg2: memref<3x3xi32, #tpu.memory_space<smem>>) -> (i32, i32, i32, i32) {
    %c0_i32 = arith.constant 0 : i32
    %c0_i32_0 = arith.constant 0 : i32
    %c0_i32_1 = arith.constant 0 : i32
    return %arg0, %arg1, %c0_i32, %c0_i32_0 : i32, i32, i32, i32
  }
}

</mosaic_0001>

<llo_original>
// kernel: tpu_custom_call.1
$region0: #{tpu_custom_call.1}
  #allocation0 [shape = 'u32[]', space=smem, size = 0x4, offset = 0x4, fixed_abs, tag = 'smem constant byte address 0x4 - core index']
  #allocation1 [shape = 'u32[144,128]{1,0:T(1,128)}', space=vmem, size = 0x12000, scoped, tag = 'internal scratch']
  #allocation2 [shape = 's32[1]{0}', space=sflag, size = 0x4, scoped, tag = 'scoped memory for tpu_custom_call.1']
  #allocation3 [shape = 'u8[2048]{0}', space=smem, size = 0x800, scoped, tag = 'prefetched SMEM operand 0']
  %s0 = inlined_call_operand.vmem [shape: s32[3,3], index: 0, kind: input, shape index: {}]
  %s1 = inlined_call_operand.hbm [shape: f32[3,8,128], index: 1, kind: input, shape index: {}]
  %s2 = inlined_call_operand.hbm [shape: f32[3,8,128], index: 2, kind: input, shape index: {}]
  %s3 = inlined_call_operand.hbm [shape: f32[3,8,128], index: 3, kind: input, shape index: {}]
  %s4 = inlined_call_operand.vmem [shape: s32[8,1], index: 4, kind: input, shape index: {}]
  %s5 = inlined_call_operand.vmem [shape: s32[1,8], index: 5, kind: input, shape index: {}]
  %s6 = inlined_call_operand.hbm [shape: f32[3,1,8,128], index: 6, kind: output, shape index: {}]
  %s7 = sld [smem:[#allocation0]]
  $region65: #{tpu_custom_call.1} parent=0
    _
  %s9 = ssub.s32 1, %s7
  %s10 = scalar_select 0, %s9, %s7
  %s11 = sshll.u32 %s0, 4
  %s12 = int_to_ptr.vmem [resolvable:$true] %s11
  %14 = dma.vmem_to_smem %s12, 64, [#allocation3], [#allocation2]
  %15 = dma.done [#allocation2], 64
  %16 = sfence
  $region1: #{tpu_custom_call.1} parent=0
    #allocation4 [shape = 'u8[8192]{0}', space=vmem, size = 0x2000, scoped, tag = 'input window, operand 1']
    #allocation5 [shape = 's32[2]{0}', space=sflag, size = 0x8, scoped, tag = 'scoped memory for tpu_custom_call.1']
    #allocation6 [shape = 's32[2]{0}', space=sflag, size = 0x8, scoped, tag = 'scoped memory for tpu_custom_call.1']
    #allocation7 [shape = 'u8[8192]{0}', space=vmem, size = 0x2000, scoped, tag = 'input window, operand 2']
    #allocation8 [shape = 's32[2]{0}', space=sflag, size = 0x8, scoped, tag = 'scoped memory for tpu_custom_call.1']
    #allocation9 [shape = 'u8[8192]{0}', space=vmem, size = 0x2000, scoped, tag = 'input window, operand 3']
    #allocation10 [shape = 'u8[8192]{0}', space=vmem, size = 0x2000, scoped, tag = 'output window, operand 0']
    %17 = vsyncpa [#allocation5], 0
    %s18 = scalar_lea.sflag [#allocation5], 1
    %19 = vsyncpa %s18, 0
    %20 = vsyncpa [#allocation8], 0
    %s21 = scalar_lea.sflag [#allocation8], 1
    %22 = vsyncpa %s21, 0
    %23 = vsyncpa [#allocation6], 0
    %s24 = scalar_lea.sflag [#allocation6], 1
    %25 = vsyncpa %s24, 0
    loop: start=0, step=1, limit=5
    $region2: #{tpu_custom_call.1} parent=1 // loop_pre_header
      _
    $region3: #{tpu_custom_call.1} parent=1 // loop_header
      %s27 = sphi 0, %s31
      %p28 = scmp.ge.s32.totalorder %s27, 5
      %s34 = sphi 0, %s46
      %s35 = sphi 0, %s42
      %s36 = sphi 0, %s34
      %s37 = sphi 0, %s35
      %s38 = sphi 0, %s36
      %s39 = sphi 0, %s37
      %s55 = sphi 0, %s57
      %s58 = sphi 0, %s55
      %s59 = sphi 0, %s58
      %s75 = sphi 0, %s59
      %s87 = sphi 0, %s89
      %s90 = sphi 0, %s87
      %s91 = sphi 0, %s90
      %s107 = sphi 0, %s91
      %s119 = sphi 0, %s121
      %s122 = sphi 0, %s119
      %s123 = sphi 0, %s122
      %s139 = sphi 0, %s123
      %s145 = sphi 0, %s147
      %s148 = sphi 0, %s145
      %s149 = sphi 0, %s148
      %s165 = sphi 0, %s149
      %s169 = sphi 0, %s169
      %s171 = sphi 0, %s169
      %s172 = sphi 0, %s171
      %s186 = sphi 0, %s172
      %s194 = sphi 0, %s196
      %s197 = sphi 0, %s194
      %s198 = sphi 0, %s197
      %s214 = sphi 0, %s198
    $region4: #{tpu_custom_call.1} parent=1 // loop_header_branch
      %30 = sbr.rel (%p28) target = $region8
    $region5: #{tpu_custom_call.1} parent=1 // loop_body
      %s32 = ssub.s32 %s27, 1
      %s33 = ssub.s32 %s27, 2
      %s40 = sadd.s32 1, %s35
      %p41 = scmp.ge.s32.totalorder %s40, 1
      %s42 = scalar_select %p41, 0, %s40
      %s43 = sadd.s32 1, %s34
      %s44 = scalar_select %p41, %s43, %s34
      %p45 = scmp.ge.s32.totalorder %s44, 3
      %s46 = scalar_select %p45, 0, %s44
      %s47 = smul.u32 %s34, 128
      %s48 = sld [smem:[#allocation3 + %s47]]
      %s49 = smul.u32 %s46, 128
      %s50 = sld [smem:[#allocation3 + %s49]]
      %s51 = ssub.s32 %s48, %s50
      %s52 = ssub.s32 %s35, %s42
      %s53 = sor.u32 %s51, %s52
      %p54 = scmp.eq.s32.totalorder %s53, 0
      %s56 = sadd.s32 %s55, 1
      %s57 = scalar_select %p54, %s55, %s56
      %p60 = pneg %p54
      %p61 = scmp.eq.s32.totalorder %s27, 2
      %p62 = por %p60, %p61
      %p63 = scmp.ne.s32.totalorder %s55, %s58
      %p64 = scmp.eq.s32.totalorder %s27, 0
      %p65 = por %p63, %p64
      %p66 = scmp.ne.s32.totalorder %s55, %s58
      %p67 = scmp.eq.s32.totalorder %s32, 2
      %p68 = por %p66, %p67
      %p69 = scmp.ne.s32.totalorder %s58, %s59
      %p70 = scmp.eq.s32.totalorder %s32, 0
      %p71 = por %p69, %p70
      %p72 = scmp.ne.s32.totalorder %s58, %s59
      %p73 = scmp.eq.s32.totalorder %s33, 2
      %p74 = por %p72, %p73
      %p76 = scmp.ne.s32.totalorder %s59, %s75
      %p77 = scmp.eq.s32.totalorder %s33, 0
      %p78 = por %p76, %p77
      %s79 = smul.u32 %s34, 128
      %s80 = sadd.s32 %s79, 1
      %s81 = sld [smem:[#allocation3 + %s80]]
      %s82 = smul.u32 %s46, 128
      %s83 = sadd.s32 %s82, 1
      %s84 = sld [smem:[#allocation3 + %s83]]
      %s85 = ssub.s32 %s81, %s84
      %p86 = scmp.eq.s32.totalorder %s85, 0
      %s88 = sadd.s32 %s87, 1
      %s89 = scalar_select %p86, %s87, %s88
      %p92 = pneg %p86
      %p93 = scmp.eq.s32.totalorder %s27, 2
      %p94 = por %p92, %p93
      %p95 = scmp.ne.s32.totalorder %s87, %s90
      %p96 = scmp.eq.s32.totalorder %s27, 0
      %p97 = por %p95, %p96
      %p98 = scmp.ne.s32.totalorder %s87, %s90
      %p99 = scmp.eq.s32.totalorder %s32, 2
      %p100 = por %p98, %p99
      %p101 = scmp.ne.s32.totalorder %s90, %s91
      %p102 = scmp.eq.s32.totalorder %s32, 0
      %p103 = por %p101, %p102
      %p104 = scmp.ne.s32.totalorder %s90, %s91
      %p105 = scmp.eq.s32.totalorder %s33, 2
      %p106 = por %p104, %p105
      %p108 = scmp.ne.s32.totalorder %s91, %s107
      %p109 = scmp.eq.s32.totalorder %s33, 0
      %p110 = por %p108, %p109
      %s111 = smul.u32 %s34, 128
      %s112 = sadd.s32 %s111, 2
      %s113 = sld [smem:[#allocation3 + %s112]]
      %s114 = smul.u32 %s46, 128
      %s115 = sadd.s32 %s114, 2
      %s116 = sld [smem:[#allocation3 + %s115]]
      %s117 = ssub.s32 %s113, %s116
      %p118 = scmp.eq.s32.totalorder %s117, 0
      %s120 = sadd.s32 %s119, 1
      %s121 = scalar_select %p118, %s119, %s120
      %p124 = pneg %p118
      %p125 = scmp.eq.s32.totalorder %s27, 2
      %p126 = por %p124, %p125
      %p127 = scmp.ne.s32.totalorder %s119, %s122
      %p128 = scmp.eq.s32.totalorder %s27, 0
      %p129 = por %p127, %p128
      %p130 = scmp.ne.s32.totalorder %s119, %s122
      %p131 = scmp.eq.s32.totalorder %s32, 2
      %p132 = por %p130, %p131
      %p133 = scmp.ne.s32.totalorder %s122, %s123
      %p134 = scmp.eq.s32.totalorder %s32, 0
      %p135 = por %p133, %p134
      %p136 = scmp.ne.s32.totalorder %s122, %s123
      %p137 = scmp.eq.s32.totalorder %s33, 2
      %p138 = por %p136, %p137
      %p140 = scmp.ne.s32.totalorder %s123, %s139
      %p141 = scmp.eq.s32.totalorder %s33, 0
      %p142 = por %p140, %p141
      %s143 = ssub.s32 %s35, %s42
      %p144 = scmp.eq.s32.totalorder %s143, 0
      %s146 = sadd.s32 %s145, 1
      %s147 = scalar_select %p144, %s145, %s146
      %p150 = pneg %p144
      %p151 = scmp.eq.s32.totalorder %s27, 2
      %p152 = por %p150, %p151
      %p153 = scmp.ne.s32.totalorder %s145, %s148
      %p154 = scmp.eq.s32.totalorder %s27, 0
      %p155 = por %p153, %p154
      %p156 = scmp.ne.s32.totalorder %s145, %s148
      %p157 = scmp.eq.s32.totalorder %s32, 2
      %p158 = por %p156, %p157
      %p159 = scmp.ne.s32.totalorder %s148, %s149
      %p160 = scmp.eq.s32.totalorder %s32, 0
      %p161 = por %p159, %p160
      %p162 = scmp.ne.s32.totalorder %s148, %s149
      %p163 = scmp.eq.s32.totalorder %s33, 2
      %p164 = por %p162, %p163
      %p166 = scmp.ne.s32.totalorder %s149, %s165
      %p167 = scmp.eq.s32.totalorder %s33, 0
      %p168 = por %p166, %p167
      %s170 = sadd.s32 %s169, 1
      %p173 = scmp.eq.s32.totalorder %s27, 2
      %p174 = scmp.ne.s32.totalorder %s169, %s171
      %p175 = scmp.eq.s32.totalorder %s27, 0
      %p176 = por %p174, %p175
      %p177 = scmp.ne.s32.totalorder %s169, %s171
      %p178 = scmp.eq.s32.totalorder %s32, 2
      %p179 = por %p177, %p178
      %p180 = scmp.ne.s32.totalorder %s171, %s172
      %p181 = scmp.eq.s32.totalorder %s32, 0
      %p182 = por %p180, %p181
      %p183 = scmp.ne.s32.totalorder %s171, %s172
      %p184 = scmp.eq.s32.totalorder %s33, 2
      %p185 = por %p183, %p184
      %p187 = scmp.ne.s32.totalorder %s172, %s186
      %p188 = scmp.eq.s32.totalorder %s33, 0
      %p189 = por %p187, %p188
      %s190 = ssub.s32 %s34, %s46
      %s191 = ssub.s32 %s35, %s42
      %s192 = sor.u32 %s190, %s191
      %p193 = scmp.eq.s32.totalorder %s192, 0
      %s195 = sadd.s32 %s194, 1
      %s196 = scalar_select %p193, %s194, %s195
      %p199 = pneg %p193
      %p200 = scmp.eq.s32.totalorder %s27, 2
      %p201 = por %p199, %p200
      %p202 = scmp.ne.s32.totalorder %s194, %s197
      %p203 = scmp.eq.s32.totalorder %s27, 0
      %p204 = por %p202, %p203
      %p205 = scmp.ne.s32.totalorder %s194, %s197
      %p206 = scmp.eq.s32.totalorder %s32, 2
      %p207 = por %p205, %p206
      %p208 = scmp.ne.s32.totalorder %s197, %s198
      %p209 = scmp.eq.s32.totalorder %s32, 0
      %p210 = por %p208, %p209
      %p211 = scmp.ne.s32.totalorder %s197, %s198
      %p212 = scmp.eq.s32.totalorder %s33, 2
      %p213 = por %p211, %p212
      %p215 = scmp.ne.s32.totalorder %s198, %s214
      %p216 = scmp.eq.s32.totalorder %s33, 0
      %p217 = por %p215, %p216
      %p218 = scmp.le.s32.totalorder 1, %s27
      %p219 = scmp.lt.s32.totalorder %s27, 4
      %p220 = pnand %p218, %p219
      %p221 = pneg %p220
      // Predicated region
      $region9: #{tpu_custom_call.1} parent=5 // pred_check
        _
      $region10: #{tpu_custom_call.1} parent=5 // pred_check_branch
        %223 = sbr.rel (%p220) target = $region12
      $region11: #{tpu_custom_call.1} parent=5 // pred_region
        %s224 = ssub.s32 %s27, 1
        // Predicated region
        $region13: #{tpu_custom_call.1} parent=11 // pred_check
          %p225 = pneg %p161
        $region14: #{tpu_custom_call.1} parent=11 // pred_check_branch
          %227 = sbr.rel (%p225) target = $region16
        $region15: #{tpu_custom_call.1} parent=11 // pred_region
          %p228 = scmp.lt.s32.totalorder %s37, 0
          %s229 = scalar_select %p228, %s37, 0
          %s230 = smul.addr %s229, 8
          %s231 = scalar_lea.vmem %s4, %s230
        $region16: #{tpu_custom_call.1} parent=11 // pred_fallthru
          _
        // Predicated region
        $region17: #{tpu_custom_call.1} parent=11 // pred_check
          %p232 = pneg %p182
        $region18: #{tpu_custom_call.1} parent=11 // pred_check_branch
          %234 = sbr.rel (%p232) target = $region20
        $region19: #{tpu_custom_call.1} parent=11 // pred_region
          _
        $region20: #{tpu_custom_call.1} parent=11 // pred_fallthru
          _
      $region12: #{tpu_custom_call.1} parent=5 // pred_fallthru
        _
      %p235 = scmp.lt.s32.totalorder %s27, 3
      // Predicated region
      $region21: #{tpu_custom_call.1} parent=5 // pred_check
        %p236 = pneg %p235
      $region22: #{tpu_custom_call.1} parent=5 // pred_check_branch
        %238 = sbr.rel (%p236) target = $region24
      $region23: #{tpu_custom_call.1} parent=5 // pred_region
        // Predicated region
        $region25: #{tpu_custom_call.1} parent=23 // pred_check
          %p239 = pneg %p65
        $region26: #{tpu_custom_call.1} parent=23 // pred_check_branch
          %241 = sbr.rel (%p239) target = $region28
        $region27: #{tpu_custom_call.1} parent=23 // pred_region
          %s242 = sand.u32 %s55, 1
          %s243 = scalar_lea.sflag [#allocation5], %s242
          %s244 = sand.u32 %s55, 1
          %s245 = smul.addr %s244, 8
          %s246 = scalar_lea.vmem [#allocation4], %s245
          %s247 = smul.u32 %s34, 128
          %s248 = sld [smem:[#allocation3 + %s247]]
          %s250 = ssub.s32 128, 128
          %251 = vsyncadd %s243, %s250
          %s252 = sadd.s32 %s35, %s248
          %s253 = smul.addr %s252, 128
          %s254 = scalar_lea.hbm %s1, %s253
          %s256 = sshll.u32 %s246, 4
          %s257 = int_to_ptr.vmem [resolvable:$true] %s256
          %259 = dma.hbm_to_vmem [thread:$0]  %s254, 128, %s257, %s243
        $region28: #{tpu_custom_call.1} parent=23 // pred_fallthru
          _
        // Predicated region
        $region29: #{tpu_custom_call.1} parent=23 // pred_check
          %p260 = pneg %p97
        $region30: #{tpu_custom_call.1} parent=23 // pred_check_branch
          %262 = sbr.rel (%p260) target = $region32
        $region31: #{tpu_custom_call.1} parent=23 // pred_region
          %s263 = sand.u32 %s27, 1
          %s264 = scalar_lea.sflag [#allocation8], %s263
          %s265 = sand.u32 %s87, 1
          %s266 = smul.addr %s265, 8
          %s267 = scalar_lea.vmem [#allocation7], %s266
          %s268 = smul.u32 %s34, 128
          %s269 = sadd.s32 %s268, 1
          %s270 = sld [smem:[#allocation3 + %s269]]
          %s272 = ssub.s32 128, 128
          %273 = vsyncadd %s264, %s272
          %s274 = smul.addr %s270, 128
          %s275 = scalar_lea.hbm %s2, %s274
          %s277 = sshll.u32 %s267, 4
          %s278 = int_to_ptr.vmem [resolvable:$true] %s277
          %280 = dma.hbm_to_vmem [thread:$0]  %s275, 128, %s278, %s264
        $region32: #{tpu_custom_call.1} parent=23 // pred_fallthru
          _
        // Predicated region
        $region33: #{tpu_custom_call.1} parent=23 // pred_check
          %p281 = pneg %p129
        $region34: #{tpu_custom_call.1} parent=23 // pred_check_branch
          %283 = sbr.rel (%p281) target = $region36
        $region35: #{tpu_custom_call.1} parent=23 // pred_region
          %s284 = sand.u32 %s27, 1
          %s285 = scalar_lea.sflag [#allocation8], %s284
          %s286 = sand.u32 %s119, 1
          %s287 = smul.addr %s286, 8
          %s288 = scalar_lea.vmem [#allocation9], %s287
          %s289 = smul.u32 %s34, 128
          %s290 = sadd.s32 %s289, 2
          %s291 = sld [smem:[#allocation3 + %s290]]
          %s293 = ssub.s32 128, 128
          %294 = vsyncadd %s285, %s293
          %s295 = smul.addr %s291, 128
          %s296 = scalar_lea.hbm %s3, %s295
          %s298 = sshll.u32 %s288, 4
          %s299 = int_to_ptr.vmem [resolvable:$true] %s298
          %301 = dma.hbm_to_vmem [thread:$0]  %s296, 128, %s299, %s285
        $region36: #{tpu_custom_call.1} parent=23 // pred_fallthru
          _
      $region24: #{tpu_custom_call.1} parent=5 // pred_fallthru
        _
      %p302 = scmp.le.s32.totalorder 1, %s27
      %p303 = scmp.lt.s32.totalorder %s27, 4
      %p304 = pnand %p302, %p303
      %p305 = pneg %p304
      // Predicated region
      $region37: #{tpu_custom_call.1} parent=5 // pred_check
        _
      $region38: #{tpu_custom_call.1} parent=5 // pred_check_branch
        %307 = sbr.rel (%p304) target = $region40
      $region39: #{tpu_custom_call.1} parent=5 // pred_region
        %s308 = ssub.s32 %s27, 1
        %s309 = sand.u32 %s58, 1
        %s310 = scalar_lea.sflag [#allocation5], %s309
        %s311 = sand.u32 %s58, 1
        %s312 = smul.addr %s311, 8
        %s313 = scalar_lea.vmem [#allocation4], %s312
        // Predicated region
        $region41: #{tpu_custom_call.1} parent=39 // pred_check
          %p314 = pneg %p71
        $region42: #{tpu_custom_call.1} parent=39 // pred_check_branch
          %316 = sbr.rel (%p314) target = $region44
        $region43: #{tpu_custom_call.1} parent=39 // pred_region
          %317 = dma.done %s310, 128
        $region44: #{tpu_custom_call.1} parent=39 // pred_fallthru
          _
        %s318 = sand.u32 %s32, 1
        %s319 = scalar_lea.sflag [#allocation8], %s318
        %s320 = sand.u32 %s90, 1
        %s321 = smul.addr %s320, 8
        %s322 = scalar_lea.vmem [#allocation7], %s321
        // Predicated region
        $region45: #{tpu_custom_call.1} parent=39 // pred_check
          %p323 = pneg %p103
        $region46: #{tpu_custom_call.1} parent=39 // pred_check_branch
          %325 = sbr.rel (%p323) target = $region48
        $region47: #{tpu_custom_call.1} parent=39 // pred_region
          %326 = dma.done %s319, 128
        $region48: #{tpu_custom_call.1} parent=39 // pred_fallthru
          _
        %s327 = sand.u32 %s32, 1
        %s328 = scalar_lea.sflag [#allocation8], %s327
        %s329 = sand.u32 %s122, 1
        %s330 = smul.addr %s329, 8
        %s331 = scalar_lea.vmem [#allocation9], %s330
        // Predicated region
        $region49: #{tpu_custom_call.1} parent=39 // pred_check
          %p332 = pneg %p135
        $region50: #{tpu_custom_call.1} parent=39 // pred_check_branch
          %334 = sbr.rel (%p332) target = $region52
        $region51: #{tpu_custom_call.1} parent=39 // pred_region
          %335 = dma.done %s328, 128
        $region52: #{tpu_custom_call.1} parent=39 // pred_fallthru
          _
        %s336 = sand.u32 %s58, 1
        %s337 = scalar_lea.sflag [#allocation5], %s336
        %s338 = sand.u32 %s58, 1
        %s339 = smul.addr %s338, 8
        %s340 = scalar_lea.vmem [#allocation4], %s339
        %p341 = pneg %p71
        %p342 = pneg %p68
        %s343 = sand.u32 %s32, 1
        %s344 = scalar_lea.sflag [#allocation8], %s343
        %s345 = sand.u32 %s90, 1
        %s346 = smul.addr %s345, 8
        %s347 = scalar_lea.vmem [#allocation7], %s346
        %p348 = pneg %p103
        %p349 = pneg %p100
        %s350 = sand.u32 %s32, 1
        %s351 = scalar_lea.sflag [#allocation8], %s350
        %s352 = sand.u32 %s122, 1
        %s353 = smul.addr %s352, 8
        %s354 = scalar_lea.vmem [#allocation9], %s353
        %p355 = pneg %p135
        %p356 = pneg %p132
        %p357 = scmp.lt.s32.totalorder %s37, 0
        %s358 = scalar_select %p357, %s37, 0
        %s359 = smul.addr %s358, 8
        %s360 = scalar_lea.vmem %s4, %s359
        %p361 = pneg %p161
        %p362 = pneg %p158
        %p363 = pneg %p182
        %p364 = pneg %p179
        %p365 = pneg %p210
        %p366 = pneg %p207
        %s367 = sand.u32 %s197, 1
        %s368 = scalar_lea.sflag [#allocation6], %s367
        %s369 = sand.u32 %s197, 1
        %s370 = smul.addr %s369, 8
        %s371 = scalar_lea.vmem [#allocation10], %s370
        %s372 = smul.u32 %s36, 128
        %s373 = sld [smem:[#allocation3 + %s372]]
        %s374 = smul.u32 %s36, 128
        %s375 = sadd.s32 %s374, 1
        %s376 = sld [smem:[#allocation3 + %s375]]
        %s377 = smul.u32 %s36, 128
        %s378 = sadd.s32 %s377, 2
        %s379 = sld [smem:[#allocation3 + %s378]]
        %p380 = scmp.lt.s32.totalorder %s37, 0
        %s381 = scalar_select %p380, %s37, 0
        %s382 = smul.addr %s381, 8
        %s383 = scalar_lea.vmem %s4, %s382
        %v385 = vld [vmem:[%s313] sm:$0xff]
        %v386 = vld [vmem:[%s322] sm:$0xff]
        %v387 = vld [vmem:[%s331] sm:$0xff]
        %v388 = vmul.f32 %v385, %v385
        %389 = vadd.xlane.f32.xlu0 %v388
        %v390 = vpop.xlane.xlu0 %389
        %v391 = vmax.f32 %v390, 1e-16
        %v392 = vrsqrt.pop %v391
        %v393 = vmul.f32 %v386, %v386
        %394 = vadd.xlane.f32.xlu0 %v393
        %v395 = vpop.xlane.xlu0 %394
        %v396 = vmax.f32 %v395, 1e-16
        %v397 = vrsqrt.pop %v396
        %v398 = vmul.f32 %v387, %v387
        %399 = vadd.xlane.f32.xlu0 %v398
        %v400 = vpop.xlane.xlu0 %399
        %v401 = vmax.f32 %v400, 1e-16
        %v402 = vrsqrt.pop %v401
        %v403 = vmul.f32 %v392, 1.4285715
        %v404 = vmul.f32 %v385, %v403
        %v405 = vpack.c.bf16 %v404, %v404
        %v406 = vmul.f32 %v386, %v397
        %v407 = vpack.c.bf16 %v406, %v406
        %v408 = vmul.f32 %v387, %v402
        %v409 = vpack.c.bf16 %v408, %v408
        %410 = vmatprep.subr.bf16.mxu0 0
        %411 = vmatpush1.bf16.xpose.msra.mxu0 %v407
        %412 = vmatprep.subr.bf16.mxu0 0
        %413 = vmatpush1.bf16.xpose.msra.mxu0 0
        %414 = vmatprep.subr.bf16.mxu0 0
        %415 = vmatpush1.bf16.xpose.msra.mxu0 0
        %416 = vmatprep.subr.bf16.mxu0 0
        %417 = vmatpush1.bf16.xpose.msra.mxu0 0
        %418 = vmatprep.subr.bf16.mxu0 0
        %419 = vmatpush1.bf16.xpose.msra.mxu0 0
        %420 = vmatprep.subr.bf16.mxu0 0
        %421 = vmatpush1.bf16.xpose.msra.mxu0 0
        %422 = vmatprep.subr.bf16.mxu0 0
        %423 = vmatpush1.bf16.xpose.msra.mxu0 0
        %424 = vmatprep.subr.bf16.mxu0 0
        %425 = vmatpush1.bf16.xpose.msra.mxu0 0
        %426 = vmatprep.subr.bf16.mxu0 0
        %427 = vmatpush1.bf16.xpose.msra.mxu0 0
        %428 = vmatprep.subr.bf16.mxu0 0
        %429 = vmatpush1.bf16.xpose.msra.mxu0 0
        %430 = vmatprep.subr.bf16.mxu0 0
        %431 = vmatpush1.bf16.xpose.msra.mxu0 0
        %432 = vmatprep.subr.bf16.mxu0 0
        %433 = vmatpush1.bf16.xpose.msra.mxu0 0
        %434 = vmatprep.subr.bf16.mxu0 0
        %435 = vmatpush1.bf16.xpose.msra.mxu0 0
        %436 = vmatprep.subr.bf16.mxu0 0
        %437 = vmatpush1.bf16.xpose.msra.mxu0 0
        %438 = vmatprep.subr.bf16.mxu0 0
        %439 = vmatpush1.bf16.xpose.msra.mxu0 0
        %440 = vmatprep.subr.bf16.mxu0 0
        %441 = vmatpush1.bf16.xpose.msra.mxu0 0
        %442 = vmatprep.mubr.bf16.mxu0 0
        %443 = vmatmul.mubr.bf16.gmra.mrb[0].mxu0 %v405
        %v444 = vpop.f32.mrb[0].mxu0
        %v445 = vadd.f32 0.0, %v444
        %v446 = vpop.f32.mrb[0].mxu0
        %v447 = vpop.f32.mrb[0].mxu0
        %v448 = vpop.f32.mrb[0].mxu0
        %449 = vdwg.mxu0
        %450 = vmatprep.subr.bf16.mxu0 0
        %451 = vmatpush1.bf16.xpose.msra.mxu0 %v409
        %452 = vmatprep.subr.bf16.mxu0 0
        %453 = vmatpush1.bf16.xpose.msra.mxu0 0
        %454 = vmatprep.subr.bf16.mxu0 0
        %455 = vmatpush1.bf16.xpose.msra.mxu0 0
        %456 = vmatprep.subr.bf16.mxu0 0
        %457 = vmatpush1.bf16.xpose.msra.mxu0 0
        %458 = vmatprep.subr.bf16.mxu0 0
        %459 = vmatpush1.bf16.xpose.msra.mxu0 0
        %460 = vmatprep.subr.bf16.mxu0 0
        %461 = vmatpush1.bf16.xpose.msra.mxu0 0
        %462 = vmatprep.subr.bf16.mxu0 0
        %463 = vmatpush1.bf16.xpose.msra.mxu0 0
        %464 = vmatprep.subr.bf16.mxu0 0
        %465 = vmatpush1.bf16.xpose.msra.mxu0 0
        %466 = vmatprep.subr.bf16.mxu0 0
        %467 = vmatpush1.bf16.xpose.msra.mxu0 0
        %468 = vmatprep.subr.bf16.mxu0 0
        %469 = vmatpush1.bf16.xpose.msra.mxu0 0
        %470 = vmatprep.subr.bf16.mxu0 0
        %471 = vmatpush1.bf16.xpose.msra.mxu0 0
        %472 = vmatprep.subr.bf16.mxu0 0
        %473 = vmatpush1.bf16.xpose.msra.mxu0 0
        %474 = vmatprep.subr.bf16.mxu0 0
        %475 = vmatpush1.bf16.xpose.msra.mxu0 0
        %476 = vmatprep.subr.bf16.mxu0 0
        %477 = vmatpush1.bf16.xpose.msra.mxu0 0
        %478 = vmatprep.subr.bf16.mxu0 0
        %479 = vmatpush1.bf16.xpose.msra.mxu0 0
        %480 = vmatprep.subr.bf16.mxu0 0
        %481 = vmatpush1.bf16.xpose.msra.mxu0 0
        %482 = vmatprep.mubr.bf16.mxu0 0
        %483 = vmatmul.mubr.bf16.gmra.mrb[0].mxu0 %v405
        %v484 = vpop.f32.mrb[0].mxu0
        %v485 = vadd.f32 0.0, %v484
        %v486 = vpop.f32.mrb[0].mxu0
        %v487 = vpop.f32.mrb[0].mxu0
        %v488 = vpop.f32.mrb[0].mxu0
        %489 = vdwg.mxu0
        %v490 = vld [vmem:[%s383] sm:$0xff]
        %v491 = vld [vmem:[%s5] sm:$0x1]
        %492 = vset.pattern.permute.xlu0 0
        %493 = vperm.xlu0 %492, %v490
        %v494 = vpop.permute.xlu0 %493
        %v495 = vlaneseq
        %v496 = vshrl.u32 %v495, 7
        %v497 = vsub.s32 0, %v496
        %v498 = vrot.slane %v491, %v497
        %vm499 = vcmp.eq.s32.totalorder %v494, %v498
        %v500 = vsel %vm499, 1, 0
        %v501 = vcvt.s32.f32 %v500
        %v502 = vmul.f32 %v445, 1.442695
        %v503 = vpow.pop %v502
        %v504 = vmul.f32 %v485, 1.442695
        %v505 = vpow.pop %v504
        %v506 = vadd.f32 %v503, %v505
        %v507 = vsel %vm499, 0.0, %v506
        %vm508 = vcmask 64512
        %v509 = vsel %vm508, %v507, 0.0
        %510 = vadd.xlane.f32.xlu0 %v509
        %v511 = vpop.xlane.xlu0 %510
        %v512 = vadd.f32 %v503, %v511
        %v513 = vlog2.pop %v512
        %v514 = vmul.f32 %v513, 0.6931472
        %v515 = vsub.f32 %v445, %v514
        %v516 = vadd.f32 %v505, %v511
        %v517 = vlog2.pop %v516
        %v518 = vmul.f32 %v517, 0.6931472
        %v519 = vsub.f32 %v485, %v518
        %v520 = vadd.f32 %v515, %v519
        %v521 = vsel %vm499, %v520, 0.0
        %v522 = vsel %vm508, %v521, 0.0
        %523 = vadd.xlane.f32.xlu0 %v522
        %v524 = vpop.xlane.xlu0 %523
        %v525 = vsub.f32 0.0, %v524
        %s526 = smul.u32 %s37, 8
        %v527 = vlaneseq
        %v528 = vshrl.u32 %v527, 7
        %v529 = vlaneseq
        %v530 = vand.u32 %v529, 127
        %v531 = vstv %s526
        %v532 = vadd.s32 %v528, %v531
        %vm533 = vcmp.eq.s32.totalorder %v530, %v532
        %v534 = vsel %vm533, %v445, 0.0
        %v535 = vsel %vm508, %v534, 0.0
        %536 = vadd.xlane.f32.xlu0 %v535
        %v537 = vpop.xlane.xlu0 %536
        %v538 = vsel %vm533, %v485, 0.0
        %v539 = vsel %vm508, %v538, 0.0
        %540 = vadd.xlane.f32.xlu0 %v539
        %v541 = vpop.xlane.xlu0 %540
        %v542 = vsel %vm533, %v503, 0.0
        %v543 = vsel %vm508, %v542, 0.0
        %544 = vadd.xlane.f32.xlu0 %v543
        %v545 = vpop.xlane.xlu0 %544
        %v546 = vsel %vm533, %v505, 0.0
        %v547 = vsel %vm508, %v546, 0.0
        %548 = vadd.xlane.f32.xlu0 %v547
        %v549 = vpop.xlane.xlu0 %548
        %v550 = vmul.f32 %v525, 2.0
        %v551 = vadd.f32 %v550, %v537
        %v552 = vadd.f32 %v551, %v541
        %v553 = vmul.f32 %v545, 2.0
        %v554 = vadd.f32 %v553, %v511
        %v555 = vlog2.pop %v554
        %v556 = vmul.f32 %v555, 0.6931472
        %v557 = vsub.f32 %v552, %v556
        %v558 = vmul.f32 %v549, 2.0
        %v559 = vadd.f32 %v558, %v511
        %v560 = vlog2.pop %v559
        %v561 = vmul.f32 %v560, 0.6931472
        %v562 = vsub.f32 %v557, %v561
        %v563 = vsel %vm508, %v501, 0.0
        %564 = vadd.xlane.f32.xlu0 %v563
        %v565 = vpop.xlane.xlu0 %564
        %v566 = vmul.f32 %v565, 2.0
        %v567 = vrcp.pop %v566
        %v568 = vmul.f32 %v562, %v567
        %vm569 = vcmask 7168
        %v570 = vsel %vm569, %v568, 0.0
        %571 = vadd.xlane.f32.xlu0 %v570
        %v572 = vpop.xlane.xlu0 %571
        %v573 = vrot.slane %v572, 4
        %v574 = vadd.f32 %v572, %v573
        %v575 = vrot.slane %v574, 2
        %v576 = vadd.f32 %v574, %v575
        %v577 = vrot.slane %v576, 1
        %v578 = vadd.f32 %v576, %v577
        %s579 = vtos %v578
        %s580 = smul.f32 %s579, 0.03125
        %v581 = vstv %s580
        %582 = vst [vmem:[%s371] sm:$0xff] %v581
        %s583 = sand.u32 %s197, 1
        %s584 = scalar_lea.sflag [#allocation6], %s583
        %s585 = sand.u32 %s197, 1
        %s586 = smul.addr %s585, 8
        %s587 = scalar_lea.vmem [#allocation10], %s586
        // Predicated region
        $region53: #{tpu_custom_call.1} parent=39 // pred_check
          %p588 = pneg %p207
        $region54: #{tpu_custom_call.1} parent=39 // pred_check_branch
          %590 = sbr.rel (%p588) target = $region56
        $region55: #{tpu_custom_call.1} parent=39 // pred_region
          %s592 = ssub.s32 128, 128
          %593 = vsyncadd %s584, %s592
          %s594 = sadd.s32 %s37, %s36
          %s595 = smul.addr %s594, 128
          %s596 = scalar_lea.hbm %s6, %s595
          %s598 = sshll.u32 %s587, 4
          %s599 = int_to_ptr.vmem [resolvable:$true] %s598
          %601 = dma.vmem_to_hbm [thread:$0]  %s599, 128, %s596, %s584
        $region56: #{tpu_custom_call.1} parent=39 // pred_fallthru
          _
      $region40: #{tpu_custom_call.1} parent=5 // pred_fallthru
        _
      %p602 = scmp.le.s32.totalorder 2, %s27
      // Predicated region
      $region57: #{tpu_custom_call.1} parent=5 // pred_check
        %p603 = pneg %p602
      $region58: #{tpu_custom_call.1} parent=5 // pred_check_branch
        %605 = sbr.rel (%p603) target = $region60
      $region59: #{tpu_custom_call.1} parent=5 // pred_region
        %s606 = ssub.s32 %s27, 2
        // Predicated region
        $region61: #{tpu_custom_call.1} parent=59 // pred_check
          %p607 = pneg %p213
        $region62: #{tpu_custom_call.1} parent=59 // pred_check_branch
          %609 = sbr.rel (%p607) target = $region64
        $region63: #{tpu_custom_call.1} parent=59 // pred_region
          %s610 = sand.u32 %s198, 1
          %s611 = scalar_lea.sflag [#allocation6], %s610
          %s612 = sand.u32 %s198, 1
          %s613 = smul.addr %s612, 8
          %s614 = scalar_lea.vmem [#allocation10], %s613
          %615 = dma.done %s611, 128
        $region64: #{tpu_custom_call.1} parent=59 // pred_fallthru
          _
      $region60: #{tpu_custom_call.1} parent=5 // pred_fallthru
        _
    $region6: #{tpu_custom_call.1} parent=1 // loop_footer
      %s31 = sadd.s32 1, %s27
    $region7: #{tpu_custom_call.1} parent=1 // loop_footer_branch
      %26 = sbr.rel target = $region3
    $region8: #{tpu_custom_call.1} parent=1 // loop_exit
      _
    %616 = vsyncpa [#allocation5], 1
    %s617 = scalar_lea.sflag [#allocation5], 1
    %618 = vsyncpa %s617, 1
    %619 = vsyncpa [#allocation8], 1
    %s620 = scalar_lea.sflag [#allocation8], 1
    %621 = vsyncpa %s620, 1
    %622 = vsyncpa [#allocation6], 1
    %s623 = scalar_lea.sflag [#allocation6], 1
    %624 = vsyncpa %s623, 1

</llo_original>
